<compile_context>
chip_gen: v7x
topology: tpu7x:2x2x1
jax: 0.10.0
libtpu: 0.0.40
codegen_flags: <defaults>
</compile_context>

<pallas_src>
import functools

import numpy as np
import jax
import jax.numpy as jnp
from jax.experimental import pallas as pl
from jax.experimental.pallas import tpu as pltpu


# ---------------------------------------------------------------------------
# Helpers
# ---------------------------------------------------------------------------
def _round_up(x: int, m: int) -> int:
    return ((x + m - 1) // m) * m


def _round_down(x: int, m: int) -> int:
    return (x // m) * m


def _vmem_capacity_bytes() -> int:
    """Physical VMEM per TensorCore; conservative fallback if query fails."""
    try:
        info = pltpu.get_tpu_info()
        cap = getattr(info, "vmem_capacity_bytes", None)
        if cap:
            return int(cap)
    except Exception:
        pass
    return 64 * 1024 * 1024  # v7x per-TC value; safe lower bound everywhere


def _choose_tiling(rows_out: int, d_pad: int, vmem_limit: int):
    """Pick (block_rows, sc_rows).

    sc_rows : height of the resident sin/cos angle-addition tables.
    block_rows : output tile height (multiple of sc_rows), sized so
        2 x output tile (double buffered) + 2 x 2 x S/C tables + margin
        fits under `vmem_limit`, then capped so the grid has >= 2 steps.
    """
    bytes_per_row = d_pad * 4

    if rows_out >= 16:
        sc_rows = min(512, max(8, _round_down(rows_out // 2, 8)))
    else:
        sc_rows = 8
    # Never let the S/C tables alone eat the VMEM budget (huge-d_model guard).
    max_sc = max(8, _round_down(vmem_limit // (16 * bytes_per_row), 8))
    sc_rows = min(sc_rows, max_sc)

    margin = 4 * 1024 * 1024
    fixed = 4 * sc_rows * bytes_per_row + margin        # S,C double-buffered
    tile_budget = max(sc_rows * bytes_per_row, (vmem_limit - fixed) // 2)
    block_rows = max(sc_rows, _round_down(tile_budget // bytes_per_row, sc_rows))

    # Guarantee >= 2 grid steps whenever rows allow, so v7x megacore splits.
    if rows_out > sc_rows:
        block_rows = min(block_rows, _round_up(pl.cdiv(rows_out, 2), sc_rows))
    else:
        block_rows = sc_rows
    return block_rows, sc_rows


# ---------------------------------------------------------------------------
# Kernel
# ---------------------------------------------------------------------------
def _pos_encoding_kernel(sin_ref, cos_ref, w_ref, o_ref, *, block_rows, sc_rows):
    """One (block_rows, d_pad) tile of the sinusoidal table.

    sin_ref[k, c] = sin(k * w[c] + phase[c])       (k in [0, sc_rows))
    cos_ref[k, c] = cos(k * w[c] + phase[c])
    w_ref[0, c]   = 1 / 10000 ** (2i / d_model)    (0 in padded lanes)

    pe[base + k, c] = sin_ref[k, c] * cos(base*w[c]) + cos_ref[k, c] * sin(base*w[c])

    -> 2 FMAs per element; the only transcendentals are one (1, d_pad)
       sin/cos pair per sc_rows output rows.
    """
    i = pl.program_id(0)
    w = w_ref[...]                           # (1, d_pad), resident
    n_sub = block_rows // sc_rows
    for q in range(n_sub):                   # static, fully unrolled
        # Exact in int32; float32 is exact for positions < 2^24 (ample).
        base = (i * block_rows + q * sc_rows).astype(jnp.float32)
        ang = base * w                       # (1, d_pad)
        sb = jnp.sin(ang)
        cb = jnp.cos(ang)
        o_ref[pl.ds(q * sc_rows, sc_rows), :] = sin_ref[...] * cb + cos_ref[...] * sb


# ---------------------------------------------------------------------------
# Wrapper
# ---------------------------------------------------------------------------
def make_pos_code(max_len: int, d_model: int) -> jax.Array:
    """Builds the (max_len, d_model) positional-encoding table on TPU."""
    assert d_model % 2 == 0, "d_model must be even (matches PyTorch module)"

    d_pad = _round_up(d_model, 128)          # lane-dense output slab
    rows_out = _round_up(max_len, 8)         # rows padded only to 8

    vmem_cap = _vmem_capacity_bytes()
    vmem_limit = min(max(32 * 1024 * 1024, (vmem_cap * 3) // 4),
                     vmem_cap - 8 * 1024 * 1024)
    block_rows, sc_rows = _choose_tiling(rows_out, d_pad, vmem_limit)
    grid = (pl.cdiv(rows_out, block_rows),)

    # ---- host-side float64 precompute (cast once to f32) -------------------
    col = np.arange(d_pad)
    exp_term = (col // 2 * 2).astype(np.float64) / float(d_model)
    w64 = 1.0 / np.power(10000.0, exp_term)
    w64 = np.where(col < d_model, w64, 0.0)                  # padded lanes -> 0
    phase64 = np.where((col % 2 == 1) & (col < d_model), np.pi / 2.0, 0.0)
    k = np.arange(sc_rows, dtype=np.float64)[:, None]
    ang64 = k * w64[None, :] + phase64[None, :]
    sin_tab = jnp.asarray(np.sin(ang64), dtype=jnp.float32)  # (sc_rows, d_pad)
    cos_tab = jnp.asarray(np.cos(ang64), dtype=jnp.float32)  # (sc_rows, d_pad)
    w_row = jnp.asarray(w64[None, :], dtype=jnp.float32)     # (1, d_pad)

    kernel = functools.partial(_pos_encoding_kernel,
                               block_rows=block_rows, sc_rows=sc_rows)

    table = pl.pallas_call(
        kernel,
        out_shape=jax.ShapeDtypeStruct((rows_out, d_pad), jnp.float32),
        grid_spec=pl.GridSpec(
            grid=grid,
            in_specs=[
                # Constant index_map -> DMA'd once, resident across the grid.
                pl.BlockSpec((sc_rows, d_pad), lambda i: (0, 0)),
                pl.BlockSpec((sc_rows, d_pad), lambda i: (0, 0)),
                pl.BlockSpec((1, d_pad), lambda i: (0, 0)),
            ],
            out_specs=pl.BlockSpec((block_rows, d_pad), lambda i: (i, 0)),
        ),
        compiler_params=pltpu.CompilerParams(
            dimension_semantics=("parallel",),   # v7x: shard rows over 2 TCs
            vmem_limit_bytes=int(vmem_limit),
        ),
    )(sin_tab, cos_tab, w_row)

    if rows_out == max_len and d_pad == d_model:
        return table                              # identity: no extra HBM copy
    return table[:max_len, :d_model]


class PositionEncoding:
    """JAX/Pallas port of the PyTorch PositionEncoding module."""

    def __init__(self, max_len: int, d_model: int, device=None):
        del device  # placement handled by JAX
        self.max_len = max_len
        self.d_model = d_model
        # Fixed (non-trainable) buffer built once at init, as in PyTorch.
        self.pos_code = make_pos_code(max_len, d_model)

    def __call__(self, x: jax.Array) -> jax.Array:
        bs, length = x.shape
        return self.pos_code[:length, :]


# ---------------------------------------------------------------------------
# Reference + test
# ---------------------------------------------------------------------------
def _reference_pos_code_np(max_len: int, d_model: int) -> np.ndarray:
    """float64 numpy reference mirroring the PyTorch __init__."""
    pos = np.arange(max_len, dtype=np.float64)[:, None]
    two_i = np.arange(0, d_model, 2, dtype=np.float64)
    div = 10000.0 ** (two_i / d_model)
    pe = np.zeros((max_len, d_model), dtype=np.float64)
    pe[:, 0::2] = np.sin(pos / div)
    pe[:, 1::2] = np.cos(pos / div)
    return pe


if __name__ == "__main__":
    max_len = 16
    d_model = 32
    batch, length = 2, 8

    # Input x: only its shape (batch, length) matters, as in the PyTorch forward.
    key = jax.random.PRNGKey(0)
    x = jax.random.normal(key, (batch, length), dtype=jnp.float32)

    module = PositionEncoding(max_len, d_model)
    out = jax.block_until_ready(module(x))

    ref = _reference_pos_code_np(max_len, d_model)[:length, :]
    assert out.shape == (length, d_model), out.shape
    assert out.dtype == jnp.float32, out.dtype
    assert np.allclose(np.asarray(out), ref, atol=1e-4), "mismatch vs reference"

    # Medium lane-dense / ragged-row shape: >1 grid step, n_sub > 1, masked
    # last tile.  Tolerance accounts for f32 angle rounding at pos ~ 1000.
    med = jax.block_until_ready(make_pos_code(1000, 256))
    med_ref = _reference_pos_code_np(1000, 256)
    assert med.shape == (1000, 256), med.shape
    assert np.allclose(np.asarray(med), med_ref, atol=2e-3), "mismatch (medium)"

    print("KERNEL_OK")
</pallas_src>

<mosaic_0001>
module attributes {stable_mosaic.version = 11 : i64} {
  func.func @_pos_encoding_kernel(%arg0: i32, %arg1: memref<8x128xf32, #tpu.memory_space<vmem>>, %arg2: memref<8x128xf32, #tpu.memory_space<vmem>>, %arg3: memref<1x128xf32, #tpu.memory_space<vmem>>, %arg4: memref<8x128xf32, #tpu.memory_space<vmem>>) attributes {dimension_semantics = [#tpu.dimension_semantics<parallel>], iteration_bounds = array<i64: 2>, scalar_prefetch = 0 : i64, scratch_operands = 0 : i64, tpu.core_type = #tpu.core_type<tc>, window_params = [{pipeline_mode = #tpu.pipeline_mode<synchronous>, transform_indices = @transform_0, window_bounds = array<i64: 8, 128>}, {pipeline_mode = #tpu.pipeline_mode<synchronous>, transform_indices = @transform_1, window_bounds = array<i64: 8, 128>}, {pipeline_mode = #tpu.pipeline_mode<synchronous>, transform_indices = @transform_2, window_bounds = array<i64: 1, 128>}, {transform_indices = @transform_3, window_bounds = array<i64: 8, 128>}]} {
    %c0 = arith.constant 0 : index
    %c0_0 = arith.constant 0 : index
    %0 = vector.load %arg3[%c0, %c0_0] : memref<1x128xf32, #tpu.memory_space<vmem>>, vector<1x128xf32>
    %c8_i32 = arith.constant 8 : i32
    %1 = arith.muli %arg0, %c8_i32 : i32
    %c0_i32 = arith.constant 0 : i32
    %2 = arith.addi %1, %c0_i32 : i32
    %3 = arith.sitofp %2 : i32 to f32
    %4 = vector.broadcast %3 : f32 to vector<1x128xf32>
    %5 = arith.mulf %4, %0 : vector<1x128xf32>
    %6 = math.sin %5 : vector<1x128xf32>
    %7 = math.cos %5 : vector<1x128xf32>
    %c0_1 = arith.constant 0 : index
    %c0_2 = arith.constant 0 : index
    %8 = vector.load %arg1[%c0_1, %c0_2] : memref<8x128xf32, #tpu.memory_space<vmem>>, vector<8x128xf32>
    %9 = vector.broadcast %7 : vector<1x128xf32> to vector<8x128xf32>
    %10 = arith.mulf %8, %9 : vector<8x128xf32>
    %c0_3 = arith.constant 0 : index
    %c0_4 = arith.constant 0 : index
    %11 = vector.load %arg2[%c0_3, %c0_4] : memref<8x128xf32, #tpu.memory_space<vmem>>, vector<8x128xf32>
    %12 = vector.broadcast %6 : vector<1x128xf32> to vector<8x128xf32>
    %13 = arith.mulf %11, %12 : vector<8x128xf32>
    %14 = arith.addf %10, %13 : vector<8x128xf32>
    %c0_5 = arith.constant 0 : index
    %c0_6 = arith.constant 0 : index
    %15 = vector.load %arg4[%c0_5, %c0_6] : memref<8x128xf32, #tpu.memory_space<vmem>>, vector<8x128xf32>
    tpu.vector_store %arg4[%c0_5, %c0_6], %14 {strides = array<i32>} : memref<8x128xf32, #tpu.memory_space<vmem>>, vector<8x128xf32>,
    return
  }
  func.func @transform_0(%arg0: i32) -> (i32, i32) {
    %c0_i32 = arith.constant 0 : i32
    %c0_i32_0 = arith.constant 0 : i32
    %c0_i32_1 = arith.constant 0 : i32
    return %c0_i32, %c0_i32_0 : i32, i32
  }
  func.func @transform_1(%arg0: i32) -> (i32, i32) {
    %c0_i32 = arith.constant 0 : i32
    %c0_i32_0 = arith.constant 0 : i32
    %c0_i32_1 = arith.constant 0 : i32
    return %c0_i32, %c0_i32_0 : i32, i32
  }
  func.func @transform_2(%arg0: i32) -> (i32, i32) {
    %c0_i32 = arith.constant 0 : i32
    %c0_i32_0 = arith.constant 0 : i32
    %c0_i32_1 = arith.constant 0 : i32
    return %c0_i32, %c0_i32_0 : i32, i32
  }
  func.func @transform_3(%arg0: i32) -> (i32, i32) {
    %c0_i32 = arith.constant 0 : i32
    %c0_i32_0 = arith.constant 0 : i32
    return %arg0, %c0_i32 : i32, i32
  }
}

</mosaic_0001>

<llo_original>
// kernel: tpu_custom_call.1
$region0: #{tpu_custom_call.1}
  #allocation0 [shape = 'u32[]', space=smem, size = 0x4, offset = 0x4, fixed_abs, tag = 'smem constant byte address 0x4 - core index']
  #allocation1 [shape = 'u32[144,128]{1,0:T(1,128)}', space=vmem, size = 0x12000, scoped, tag = 'internal scratch']
  %s0 = inlined_call_operand.hbm [shape: f32[8,128], index: 0, kind: input, shape index: {}]
  %s1 = inlined_call_operand.hbm [shape: f32[8,128], index: 1, kind: input, shape index: {}]
  %s2 = inlined_call_operand.vmem [shape: f32[1,128], index: 2, kind: input, shape index: {}]
  %s3 = inlined_call_operand.hbm [shape: f32[16,128], index: 3, kind: output, shape index: {}]
  %s4 = sld [smem:[#allocation0]]
  $region53: #{tpu_custom_call.1} parent=0
    _
  %s6 = ssub.s32 1, %s4
  %s7 = scalar_select 0, %s6, %s4
  $region1: #{tpu_custom_call.1} parent=0
    #allocation2 [shape = 'u8[4096]{0}', space=vmem, size = 0x1000, scoped, tag = 'input window, operand 0, single buffered']
    #allocation3 [shape = 's32[2]{0}', space=sflag, size = 0x8, scoped, tag = 'scoped memory for tpu_custom_call.1']
    #allocation4 [shape = 's32[2]{0}', space=sflag, size = 0x8, scoped, tag = 'scoped memory for tpu_custom_call.1']
    #allocation5 [shape = 'u8[4096]{0}', space=vmem, size = 0x1000, scoped, tag = 'input window, operand 1, single buffered']
    #allocation6 [shape = 's32[1]{0}', space=sflag, size = 0x4, scoped, tag = 'scoped memory for tpu_custom_call.1']
    #allocation7 [shape = 'u8[8192]{0}', space=vmem, size = 0x2000, scoped, tag = 'output window, operand 0']
    %8 = vsyncpa [#allocation3], 0
    %9 = vsyncpa [#allocation6], 0
    %10 = vsyncpa [#allocation4], 0
    %s11 = scalar_lea.sflag [#allocation4], 1
    %12 = vsyncpa %s11, 0
    loop: start=0, step=1, limit=4
    $region2: #{tpu_custom_call.1} parent=1 // loop_pre_header
      _
    $region3: #{tpu_custom_call.1} parent=1 // loop_header
      %s14 = sphi 0, %s18
      %p15 = scmp.ge.s32.totalorder %s14, 4
      %s22 = sphi 0, %s22
      %s24 = sphi 0, %s22
      %s25 = sphi 0, %s24
      %s39 = sphi 0, %s25
      %s43 = sphi 0, %s43
      %s45 = sphi 0, %s43
      %s46 = sphi 0, %s45
      %s60 = sphi 0, %s46
      %s64 = sphi 0, %s64
      %s66 = sphi 0, %s64
      %s67 = sphi 0, %s66
      %s81 = sphi 0, %s67
      %s87 = sphi 0, %s89
      %s90 = sphi 0, %s87
      %s91 = sphi 0, %s90
      %s107 = sphi 0, %s91
    $region4: #{tpu_custom_call.1} parent=1 // loop_header_branch
      %17 = sbr.rel (%p15) target = $region8
    $region5: #{tpu_custom_call.1} parent=1 // loop_body
      %s19 = ssub.s32 %s14, 1
      %s20 = ssub.s32 %s14, 2
      %s21 = sadd.s32 %s14, 1
      %s23 = sadd.s32 %s22, 1
      %p26 = scmp.eq.s32.totalorder %s14, 1
      %p27 = scmp.ne.s32.totalorder %s22, %s24
      %p28 = scmp.eq.s32.totalorder %s14, 0
      %p29 = por %p27, %p28
      %p30 = scmp.ne.s32.totalorder %s22, %s24
      %p31 = scmp.eq.s32.totalorder %s19, 1
      %p32 = por %p30, %p31
      %p33 = scmp.ne.s32.totalorder %s24, %s25
      %p34 = scmp.eq.s32.totalorder %s19, 0
      %p35 = por %p33, %p34
      %p36 = scmp.ne.s32.totalorder %s24, %s25
      %p37 = scmp.eq.s32.totalorder %s20, 1
      %p38 = por %p36, %p37
      %p40 = scmp.ne.s32.totalorder %s25, %s39
      %p41 = scmp.eq.s32.totalorder %s20, 0
      %p42 = por %p40, %p41
      %s44 = sadd.s32 %s43, 1
      %p47 = scmp.eq.s32.totalorder %s14, 1
      %p48 = scmp.ne.s32.totalorder %s43, %s45
      %p49 = scmp.eq.s32.totalorder %s14, 0
      %p50 = por %p48, %p49
      %p51 = scmp.ne.s32.totalorder %s43, %s45
      %p52 = scmp.eq.s32.totalorder %s19, 1
      %p53 = por %p51, %p52
      %p54 = scmp.ne.s32.totalorder %s45, %s46
      %p55 = scmp.eq.s32.totalorder %s19, 0
      %p56 = por %p54, %p55
      %p57 = scmp.ne.s32.totalorder %s45, %s46
      %p58 = scmp.eq.s32.totalorder %s20, 1
      %p59 = por %p57, %p58
      %p61 = scmp.ne.s32.totalorder %s46, %s60
      %p62 = scmp.eq.s32.totalorder %s20, 0
      %p63 = por %p61, %p62
      %s65 = sadd.s32 %s64, 1
      %p68 = scmp.eq.s32.totalorder %s14, 1
      %p69 = scmp.ne.s32.totalorder %s64, %s66
      %p70 = scmp.eq.s32.totalorder %s14, 0
      %p71 = por %p69, %p70
      %p72 = scmp.ne.s32.totalorder %s64, %s66
      %p73 = scmp.eq.s32.totalorder %s19, 1
      %p74 = por %p72, %p73
      %p75 = scmp.ne.s32.totalorder %s66, %s67
      %p76 = scmp.eq.s32.totalorder %s19, 0
      %p77 = por %p75, %p76
      %p78 = scmp.ne.s32.totalorder %s66, %s67
      %p79 = scmp.eq.s32.totalorder %s20, 1
      %p80 = por %p78, %p79
      %p82 = scmp.ne.s32.totalorder %s67, %s81
      %p83 = scmp.eq.s32.totalorder %s20, 0
      %p84 = por %p82, %p83
      %s85 = ssub.s32 %s14, %s21
      %p86 = scmp.eq.s32.totalorder %s85, 0
      %s88 = sadd.s32 %s87, 1
      %s89 = scalar_select %p86, %s87, %s88
      %p92 = pneg %p86
      %p93 = scmp.eq.s32.totalorder %s14, 1
      %p94 = por %p92, %p93
      %p95 = scmp.ne.s32.totalorder %s87, %s90
      %p96 = scmp.eq.s32.totalorder %s14, 0
      %p97 = por %p95, %p96
      %p98 = scmp.ne.s32.totalorder %s87, %s90
      %p99 = scmp.eq.s32.totalorder %s19, 1
      %p100 = por %p98, %p99
      %p101 = scmp.ne.s32.totalorder %s90, %s91
      %p102 = scmp.eq.s32.totalorder %s19, 0
      %p103 = por %p101, %p102
      %p104 = scmp.ne.s32.totalorder %s90, %s91
      %p105 = scmp.eq.s32.totalorder %s20, 1
      %p106 = por %p104, %p105
      %p108 = scmp.ne.s32.totalorder %s91, %s107
      %p109 = scmp.eq.s32.totalorder %s20, 0
      %p110 = por %p108, %p109
      %p111 = scmp.le.s32.totalorder 1, %s14
      %p112 = scmp.lt.s32.totalorder %s14, 3
      %p113 = pnand %p111, %p112
      %p114 = pneg %p113
      // Predicated region
      $region9: #{tpu_custom_call.1} parent=5 // pred_check
        _
      $region10: #{tpu_custom_call.1} parent=5 // pred_check_branch
        %116 = sbr.rel (%p113) target = $region12
      $region11: #{tpu_custom_call.1} parent=5 // pred_region
        %s117 = ssub.s32 %s14, 1
        // Predicated region
        $region13: #{tpu_custom_call.1} parent=11 // pred_check
          %p118 = pneg %p35
        $region14: #{tpu_custom_call.1} parent=11 // pred_check_branch
          %120 = sbr.rel (%p118) target = $region16
        $region15: #{tpu_custom_call.1} parent=11 // pred_region
          %s122 = ssub.s32 128, 128
          %123 = vsyncadd [#allocation3], %s122
          %s125 = sshll.u32 [#allocation2], 4
          %s126 = int_to_ptr.vmem [resolvable:$true] %s125
          %128 = dma.hbm_to_vmem [thread:$0]  %s0, 128, %s126, [#allocation3]
        $region16: #{tpu_custom_call.1} parent=11 // pred_fallthru
          _
        // Predicated region
        $region17: #{tpu_custom_call.1} parent=11 // pred_check
          %p129 = pneg %p56
        $region18: #{tpu_custom_call.1} parent=11 // pred_check_branch
          %131 = sbr.rel (%p129) target = $region20
        $region19: #{tpu_custom_call.1} parent=11 // pred_region
          %s133 = ssub.s32 128, 128
          %134 = vsyncadd [#allocation6], %s133
          %s136 = sshll.u32 [#allocation5], 4
          %s137 = int_to_ptr.vmem [resolvable:$true] %s136
          %139 = dma.hbm_to_vmem [thread:$0]  %s1, 128, %s137, [#allocation6]
        $region20: #{tpu_custom_call.1} parent=11 // pred_fallthru
          _
        // Predicated region
        $region21: #{tpu_custom_call.1} parent=11 // pred_check
          %p140 = pneg %p77
        $region22: #{tpu_custom_call.1} parent=11 // pred_check_branch
          %142 = sbr.rel (%p140) target = $region24
        $region23: #{tpu_custom_call.1} parent=11 // pred_region
          _
        $region24: #{tpu_custom_call.1} parent=11 // pred_fallthru
          _
      $region12: #{tpu_custom_call.1} parent=5 // pred_fallthru
        _
      %p143 = scmp.lt.s32.totalorder %s14, 2
      // Predicated region
      $region25: #{tpu_custom_call.1} parent=5 // pred_check
        %p144 = pneg %p143
      $region26: #{tpu_custom_call.1} parent=5 // pred_check_branch
        %146 = sbr.rel (%p144) target = $region28
      $region27: #{tpu_custom_call.1} parent=5 // pred_region
        _
      $region28: #{tpu_custom_call.1} parent=5 // pred_fallthru
        _
      %p147 = scmp.le.s32.totalorder 1, %s14
      %p148 = scmp.lt.s32.totalorder %s14, 3
      %p149 = pnand %p147, %p148
      %p150 = pneg %p149
      // Predicated region
      $region29: #{tpu_custom_call.1} parent=5 // pred_check
        _
      $region30: #{tpu_custom_call.1} parent=5 // pred_check_branch
        %152 = sbr.rel (%p149) target = $region32
      $region31: #{tpu_custom_call.1} parent=5 // pred_region
        %s153 = ssub.s32 %s14, 1
        // Predicated region
        $region33: #{tpu_custom_call.1} parent=31 // pred_check
          %p154 = pneg %p35
        $region34: #{tpu_custom_call.1} parent=31 // pred_check_branch
          %156 = sbr.rel (%p154) target = $region36
        $region35: #{tpu_custom_call.1} parent=31 // pred_region
          %157 = dma.done [#allocation3], 128
        $region36: #{tpu_custom_call.1} parent=31 // pred_fallthru
          _
        // Predicated region
        $region37: #{tpu_custom_call.1} parent=31 // pred_check
          %p158 = pneg %p56
        $region38: #{tpu_custom_call.1} parent=31 // pred_check_branch
          %160 = sbr.rel (%p158) target = $region40
        $region39: #{tpu_custom_call.1} parent=31 // pred_region
          %161 = dma.done [#allocation6], 128
        $region40: #{tpu_custom_call.1} parent=31 // pred_fallthru
          _
        %p162 = pneg %p35
        %p163 = pneg %p32
        %p164 = pneg %p56
        %p165 = pneg %p53
        %p166 = pneg %p77
        %p167 = pneg %p74
        %p168 = pneg %p103
        %p169 = pneg %p100
        %s170 = sand.u32 %s90, 1
        %s171 = scalar_lea.sflag [#allocation4], %s170
        %s172 = sand.u32 %s90, 1
        %s173 = smul.addr %s172, 8
        %s174 = scalar_lea.vmem [#allocation7], %s173
        %v175 = vld [vmem:[%s2] sm:$0x1]
        %s176 = smul.u32 %s19, 8
        %s177 = scvt.s32.f32 %s176
        %v178 = vstv %s177
        %v179 = vmul.f32 %v178, %v175
        %v180 = vand.u32 2147483647, %v179
        %vm181 = vcmp.le.f32.partialorder %v180, 0.7853982
        %vm182 = vcmp.lt.s32.totalorder %v179, 0
        %v183 = vand.u32 %v179, 2139095040
        %v184 = vshrl.u32 %v183, 23
        %v185 = vsub.s32 %v184, 127
        %v186 = vand.u32 2147483647, %v179
        %v187 = vand.u32 %v186, 8388607
        %v188 = vor.u32 %v187, 8388608
        %v189 = vsub.s32 0, %v188
        %v190 = vadd.s32 %v185, 1
        %vm191 = vcmp.gt.s32.totalorder %v190, 0
        %v192 = vsel %vm191, %v190, 0
        %v193 = vshrl.u32 %v192, 5
        %v194 = vand.u32 %v192, 31
        %v195 = vsub.s32 32, %v194
        %v196 = vshrl.u32 683565275, %v195
        %v197 = vshll.u32 683565275, %v194
        %v198 = vshrl.u32 2475754826, %v195
        %v199 = vor.u32 %v197, %v198
        %v200 = vshll.u32 2475754826, %v194
        %v201 = vshrl.u32 2131351028, %v195
        %v202 = vor.u32 %v200, %v201
        %v203 = vshll.u32 2131351028, %v194
        %v204 = vshrl.u32 2102212464, %v195
        %v205 = vor.u32 %v203, %v204
        %v206 = vshll.u32 2102212464, %v194
        %v207 = vshrl.u32 920167782, %v195
        %v208 = vor.u32 %v206, %v207
        %v209 = vshll.u32 920167782, %v194
        %v210 = vshrl.u32 1326507024, %v195
        %v211 = vor.u32 %v209, %v210
        %vm212 = vcmp.lt.s32.totalorder %v193, 1
        %vm213 = vcmp.lt.s32.totalorder %v193, 2
        %vm214 = vcmp.lt.s32.totalorder %v193, 3
        %vm215 = vcmp.lt.s32.totalorder %v193, 4
        %v216 = vsel %vm212, %v196, %v199
        %v217 = vsel %vm215, %v205, 2102212464
        %v218 = vsel %vm214, %v202, %v217
        %v219 = vsel %vm213, %v216, %v218
        %v220 = vsel %vm212, %v199, %v202
        %v221 = vsel %vm215, %v208, 920167782
        %v222 = vsel %vm214, %v205, %v221
        %v223 = vsel %vm213, %v220, %v222
        %v224 = vsel %vm212, %v202, %v205
        %v225 = vsel %vm215, %v211, 1326507024
        %v226 = vsel %vm214, %v208, %v225
        %v227 = vsel %vm213, %v224, %v226
        %v228 = vshll.u32 %v188, 8
        %v229 = vmul.u32.u64.compose %v228, %v227
        %v230 = vextract.low.u32 %v229
        %v231 = vextract.high.u32 %v229
        %v232 = vmul.u32.u64.compose %v228, %v223
        %v233 = vextract.low.u32 %v232
        %v234 = vextract.high.u32 %v232
        %v235 = vmul.u32 %v228, %v219
        %v236 = vadd.s32 %v231, %v233
        %vm237 = vc.u32 %v231, %v233
        %v238 = vadd.s32 %v234, 1
        %v239 = vsel %vm237, %v238, %v234
        %v240 = vadd.s32 %v235, %v239
        %v241 = vadd.s32 %v240, 536870912
        %v242 = vshrl.u32 %v241, 30
        %v243 = vshll.u32 %v242, 30
        %v244 = vsub.s32 %v240, %v243
        %vm245 = vcmp.lt.s32.totalorder %v244, 0
        %v246 = vsub.s32 0, %v244
        %v247 = vsel %vm245, %v246, %v244
        %v248 = vclz %v247
        %v249 = vsub.s32 %v248, 2
        %vm250 = vcmp.gt.s32.totalorder 0, %v249
        %v251 = vsel %vm250, 0, %v249
        %v252 = vsub.s32 32, %v251
        %v253 = vshll.u32 %v244, %v251
        %v254 = vshrl.u32 %v236, %v252
        %v255 = vor.u32 %v253, %v254
        %v256 = vsub.s32 4294967266, %v251
        %v257 = vadd.s32 %v256, 127
        %v258 = vshll.u32 %v257, 23
        %v259 = vor.u32 4788187, %v258
        %v260 = vand.u32 2147483647, %v259
        %v262 = vcvt.s32.f32 %v255
        %v263 = vmul.f32 %v262, %v260
        %v264 = vxor.u32 %v263, 2147483648
        %v265 = vsel %vm182, %v264, %v263
        %v266 = vsub.s32 4, %v242
        %v267 = vsel %vm182, %v266, %v242
        %v268 = vsel %vm181, %v179, %v265
        %v269 = vsel %vm181, 0, %v267
        %v270 = vcosq.f32.pop %v268
        %v271 = vsinq.f32.pop %v268
        %vm272 = vweird.f32 %v179
        %v273 = vadd.s32 %v269, 3
        %v274 = vand.u32 %v273, 3
        %vm275 = vcmp.lt.s32.totalorder %v274, 2
        %vm276 = vcmp.eq.s32.totalorder %v274, 0
        %v277 = vxor.u32 %v271, 2147483648
        %v278 = vsel %vm276, %v270, %v277
        %vm279 = vcmp.eq.s32.totalorder %v274, 2
        %v280 = vxor.u32 %v270, 2147483648
        %v281 = vsel %vm279, %v280, %v271
        %v282 = vsel %vm275, %v278, %v281
        %v283 = vsel %vm272, nan, %v282
        %v284 = vand.u32 2147483647, %v179
        %vm285 = vcmp.le.f32.partialorder %v284, 0.7853982
        %vm286 = vcmp.lt.s32.totalorder %v179, 0
        %v287 = vand.u32 %v179, 2139095040
        %v288 = vshrl.u32 %v287, 23
        %v289 = vsub.s32 %v288, 127
        %v290 = vand.u32 2147483647, %v179
        %v291 = vand.u32 %v290, 8388607
        %v292 = vor.u32 %v291, 8388608
        %v293 = vsub.s32 0, %v292
        %v294 = vadd.s32 %v289, 1
        %vm295 = vcmp.gt.s32.totalorder %v294, 0
        %v296 = vsel %vm295, %v294, 0
        %v297 = vshrl.u32 %v296, 5
        %v298 = vand.u32 %v296, 31
        %v299 = vsub.s32 32, %v298
        %v300 = vshrl.u32 683565275, %v299
        %v301 = vshll.u32 683565275, %v298
        %v302 = vshrl.u32 2475754826, %v299
        %v303 = vor.u32 %v301, %v302
        %v304 = vshll.u32 2475754826, %v298
        %v305 = vshrl.u32 2131351028, %v299
        %v306 = vor.u32 %v304, %v305
        %v307 = vshll.u32 2131351028, %v298
        %v308 = vshrl.u32 2102212464, %v299
        %v309 = vor.u32 %v307, %v308
        %v310 = vshll.u32 2102212464, %v298
        %v311 = vshrl.u32 920167782, %v299
        %v312 = vor.u32 %v310, %v311
        %v313 = vshll.u32 920167782, %v298
        %v314 = vshrl.u32 1326507024, %v299
        %v315 = vor.u32 %v313, %v314
        %vm316 = vcmp.lt.s32.totalorder %v297, 1
        %vm317 = vcmp.lt.s32.totalorder %v297, 2
        %vm318 = vcmp.lt.s32.totalorder %v297, 3
        %vm319 = vcmp.lt.s32.totalorder %v297, 4
        %v320 = vsel %vm316, %v300, %v303
        %v321 = vsel %vm319, %v309, 2102212464
        %v322 = vsel %vm318, %v306, %v321
        %v323 = vsel %vm317, %v320, %v322
        %v324 = vsel %vm316, %v303, %v306
        %v325 = vsel %vm319, %v312, 920167782
        %v326 = vsel %vm318, %v309, %v325
        %v327 = vsel %vm317, %v324, %v326
        %v328 = vsel %vm316, %v306, %v309
        %v329 = vsel %vm319, %v315, 1326507024
        %v330 = vsel %vm318, %v312, %v329
        %v331 = vsel %vm317, %v328, %v330
        %v332 = vshll.u32 %v292, 8
        %v333 = vmul.u32.u64.compose %v332, %v331
        %v334 = vextract.low.u32 %v333
        %v335 = vextract.high.u32 %v333
        %v336 = vmul.u32.u64.compose %v332, %v327
        %v337 = vextract.low.u32 %v336
        %v338 = vextract.high.u32 %v336
        %v339 = vmul.u32 %v332, %v323
        %v340 = vadd.s32 %v335, %v337
        %vm341 = vc.u32 %v335, %v337
        %v342 = vadd.s32 %v338, 1
        %v343 = vsel %vm341, %v342, %v338
        %v344 = vadd.s32 %v339, %v343
        %v345 = vadd.s32 %v344, 536870912
        %v346 = vshrl.u32 %v345, 30
        %v347 = vshll.u32 %v346, 30
        %v348 = vsub.s32 %v344, %v347
        %vm349 = vcmp.lt.s32.totalorder %v348, 0
        %v350 = vsub.s32 0, %v348
        %v351 = vsel %vm349, %v350, %v348
        %v352 = vclz %v351
        %v353 = vsub.s32 %v352, 2
        %vm354 = vcmp.gt.s32.totalorder 0, %v353
        %v355 = vsel %vm354, 0, %v353
        %v356 = vsub.s32 32, %v355
        %v357 = vshll.u32 %v348, %v355
        %v358 = vshrl.u32 %v340, %v356
        %v359 = vor.u32 %v357, %v358
        %v360 = vsub.s32 4294967266, %v355
        %v361 = vadd.s32 %v360, 127
        %v362 = vshll.u32 %v361, 23
        %v363 = vor.u32 4788187, %v362
        %v364 = vand.u32 2147483647, %v363
        %v366 = vcvt.s32.f32 %v359
        %v367 = vmul.f32 %v366, %v364
        %v368 = vxor.u32 %v367, 2147483648
        %v369 = vsel %vm286, %v368, %v367
        %v370 = vsub.s32 4, %v346
        %v371 = vsel %vm286, %v370, %v346
        %v372 = vsel %vm285, %v179, %v369
        %v373 = vsel %vm285, 0, %v371
        %v374 = vcosq.f32.pop %v372
        %v375 = vsinq.f32.pop %v372
        %vm376 = vweird.f32 %v179
        %v377 = vand.u32 %v373, 3
        %vm378 = vcmp.lt.s32.totalorder %v377, 2
        %vm379 = vcmp.eq.s32.totalorder %v377, 0
        %v380 = vxor.u32 %v375, 2147483648
        %v381 = vsel %vm379, %v374, %v380
        %vm382 = vcmp.eq.s32.totalorder %v377, 2
        %v383 = vxor.u32 %v374, 2147483648
        %v384 = vsel %vm382, %v383, %v375
        %v385 = vsel %vm378, %v381, %v384
        %v386 = vsel %vm376, nan, %v385
        %v387 = vld [vmem:[#allocation2] sm:$0xff]
        %v389 = vlaneseq
        %v390 = vshrl.u32 %v389, 7
        %v391 = vsub.s32 0, %v390
        %v392 = vrot.slane %v386, %v391
        %v394 = vmul.f32 %v387, %v392
        %v395 = vld [vmem:[#allocation5] sm:$0xff]
        %v397 = vlaneseq
        %v398 = vshrl.u32 %v397, 7
        %v399 = vsub.s32 0, %v398
        %v400 = vrot.slane %v283, %v399
        %v402 = vmul.f32 %v395, %v400
        %v403 = vadd.f32 %v394, %v402
        %404 = vst [vmem:[%s174] sm:$0xff] %v403
        %s405 = sand.u32 %s90, 1
        %s406 = scalar_lea.sflag [#allocation4], %s405
        %s407 = sand.u32 %s90, 1
        %s408 = smul.addr %s407, 8
        %s409 = scalar_lea.vmem [#allocation7], %s408
        // Predicated region
        $region41: #{tpu_custom_call.1} parent=31 // pred_check
          %p410 = pneg %p100
        $region42: #{tpu_custom_call.1} parent=31 // pred_check_branch
          %412 = sbr.rel (%p410) target = $region44
        $region43: #{tpu_custom_call.1} parent=31 // pred_region
          %s414 = ssub.s32 128, 128
          %415 = vsyncadd %s406, %s414
          %s416 = smul.addr %s19, 128
          %s417 = scalar_lea.hbm %s3, %s416
          %s419 = sshll.u32 %s409, 4
          %s420 = int_to_ptr.vmem [resolvable:$true] %s419
          %422 = dma.vmem_to_hbm [thread:$0]  %s420, 128, %s417, %s406
        $region44: #{tpu_custom_call.1} parent=31 // pred_fallthru
          _
      $region32: #{tpu_custom_call.1} parent=5 // pred_fallthru
        _
      %p423 = scmp.le.s32.totalorder 2, %s14
      // Predicated region
      $region45: #{tpu_custom_call.1} parent=5 // pred_check
        %p424 = pneg %p423
      $region46: #{tpu_custom_call.1} parent=5 // pred_check_branch
        %426 = sbr.rel (%p424) target = $region48
      $region47: #{tpu_custom_call.1} parent=5 // pred_region
        %s427 = ssub.s32 %s14, 2
        // Predicated region
        $region49: #{tpu_custom_call.1} parent=47 // pred_check
          %p428 = pneg %p106
        $region50: #{tpu_custom_call.1} parent=47 // pred_check_branch
          %430 = sbr.rel (%p428) target = $region52
        $region51: #{tpu_custom_call.1} parent=47 // pred_region
          %s431 = sand.u32 %s91, 1
          %s432 = scalar_lea.sflag [#allocation4], %s431
          %s433 = sand.u32 %s91, 1
          %s434 = smul.addr %s433, 8
          %s435 = scalar_lea.vmem [#allocation7], %s434
          %436 = dma.done %s432, 128
        $region52: #{tpu_custom_call.1} parent=47 // pred_fallthru
          _
      $region48: #{tpu_custom_call.1} parent=5 // pred_fallthru
        _
    $region6: #{tpu_custom_call.1} parent=1 // loop_footer
      %s18 = sadd.s32 1, %s14
    $region7: #{tpu_custom_call.1} parent=1 // loop_footer_branch
      %13 = sbr.rel target = $region3
    $region8: #{tpu_custom_call.1} parent=1 // loop_exit
      _
    %437 = vsyncpa [#allocation3], 1
    %s438 = scalar_lea.sflag [#allocation3], 1
    %439 = vsyncpa %s438, 1
    %440 = vsyncpa [#allocation6], 1
    %441 = vsyncpa [#allocation4], 1
    %s442 = scalar_lea.sflag [#allocation4], 1
    %443 = vsyncpa %s442, 1

</llo_original>
